<compile_context>
chip_gen: v6e
topology: v6e:2x2x1
jax: 0.10.0
libtpu: 0.0.40
codegen_flags: <defaults>
</compile_context>

<pallas_src>
import jax
import jax.numpy as jnp
from jax.experimental import pallas as pl
from jax.experimental.pallas import tpu as pltpu

LN_EPS = 1e-5
BN_EPS = 1e-5
LEAKY_SLOPE = 0.2


# ----------------------------- kernels ------------------------------------ #

def layernorm_kernel(x_ref, xn_ref):
    """Per-row LayerNorm (weight=1, bias=0); f32 math, bf16 output."""
    x = x_ref[...].astype(jnp.float32)
    mu = jnp.mean(x, axis=-1, keepdims=True)
    xc = x - mu
    var = jnp.mean(xc * xc, axis=-1, keepdims=True)      # biased (PyTorch LN)
    xn_ref[...] = (xc * jax.lax.rsqrt(var + LN_EPS)).astype(xn_ref.dtype)


def encoder_kernel(xn_ref, w_ref, o_ref):
    # xn_ref: (B, D_in)  bf16, resident across all D_out tiles (constant map).
    # w_ref : (D_in, TN) bf16 weight tile (pre-transposed Linear weight).
    # o_ref : (B, TN)    output tile.

    # Linear tile: bf16 x bf16 -> f32 accumulation on the MXU.
    # (Linear bias omitted: a per-feature constant is exactly cancelled by the
    #  batch-stat BatchNorm mean subtraction below.)
    y = jnp.dot(xn_ref[...], w_ref[...], preferred_element_type=jnp.float32)

    # BatchNorm1d, training-mode batch statistics (biased var), gamma=1 beta=0.
    # Per-feature stats => independent per D_out tile; the full batch is in
    # this block, so stats are exact.
    bm = jnp.mean(y, axis=0, keepdims=True)
    yc = y - bm
    bv = jnp.mean(yc * yc, axis=0, keepdims=True)
    yn = yc * jax.lax.rsqrt(bv + BN_EPS)

    # LeakyReLU(0.2): single vmax (valid since 0 < slope < 1).
    o_ref[...] = jnp.maximum(yn, LEAKY_SLOPE * yn).astype(o_ref.dtype)


# ------------------------- sizing helpers ---------------------------------- #

def _vmem_budget_bytes(frac=0.75, fallback=64 << 20):
    """Per-generation VMEM budget: ~96 MiB on 128 MiB v5e/v6e, ~48 MiB on v7x."""
    try:
        cap = int(pltpu.get_tpu_info().vmem_capacity_bytes)
    except Exception:
        cap = fallback
    return int(cap * frac)


def _pick_tile_n(d_out, d_in, batch, budget, out_itemsize, target=512):
    """Largest lane-aligned D_out tile (<= target) dividing D_out that fits VMEM."""
    if d_out % 128 != 0:
        return d_out                                   # full width (full-dim block)

    def vmem_need(tn):
        return (2 * batch * d_in * 2          # resident bf16 xn (assume 2 buffers)
                + 2 * d_in * tn * 2           # double-buffered bf16 weight tile
                + 2 * batch * tn * out_itemsize)  # double-buffered output tile

    start = min(target, d_out)
    start -= start % 128
    for tn in range(max(start, 128), 127, -128):
        if d_out % tn == 0 and vmem_need(tn) <= budget:
            return tn
    return 128


def _pick_tile_b(batch, target=512):
    """Sublane-aligned batch tile dividing B for the LayerNorm pre-pass."""
    if batch % 8 != 0:
        return batch
    start = min(target, batch)
    start -= start % 8
    for tb in range(max(start, 8), 7, -8):
        if batch % tb == 0:
            return tb
    return batch


# ------------------------------ wrapper ------------------------------------ #

def simple_encoder(x, w_t, *, tile_n=None, out_dtype=jnp.float32):
    """x: (B, D_in) f32; w_t: (D_in, D_out) bf16 (pre-transposed Linear weight)."""
    B, D_in = x.shape
    D_out = w_t.shape[1]
    out_itemsize = jnp.dtype(out_dtype).itemsize

    vmem_limit = _vmem_budget_bytes()
    tn = tile_n if tile_n is not None else _pick_tile_n(
        D_out, D_in, B, vmem_limit, out_itemsize)
    assert D_out % tn == 0, "tile_n must divide D_out"

    # --- stage 1: LayerNorm pre-pass, bf16 xn to HBM (rows independent) ---
    tb = _pick_tile_b(B)
    xn = pl.pallas_call(
        layernorm_kernel,
        out_shape=jax.ShapeDtypeStruct((B, D_in), jnp.bfloat16),
        grid_spec=pltpu.PrefetchScalarGridSpec(
            num_scalar_prefetch=0,
            grid=(B // tb,),
            in_specs=[pl.BlockSpec((tb, D_in), lambda i: (i, 0))],
            out_specs=pl.BlockSpec((tb, D_in), lambda i: (i, 0)),
        ),
        compiler_params=pltpu.CompilerParams(
            dimension_semantics=("parallel",),
            vmem_limit_bytes=vmem_limit,
        ),
    )(x)

    # --- stage 2: Linear (bf16 MXU) + BatchNorm1d + LeakyReLU, D_out tiled ---
    return pl.pallas_call(
        encoder_kernel,
        out_shape=jax.ShapeDtypeStruct((B, D_out), out_dtype),
        grid_spec=pltpu.PrefetchScalarGridSpec(
            num_scalar_prefetch=0,
            grid=(D_out // tn,),
            in_specs=[
                pl.BlockSpec((B, D_in), lambda j: (0, 0)),    # resident bf16 xn
                pl.BlockSpec((D_in, tn), lambda j: (0, j)),   # bf16 weight tile
            ],
            out_specs=pl.BlockSpec((B, tn), lambda j: (0, j)),
        ),
        compiler_params=pltpu.CompilerParams(
            # No cross-iteration state anymore: feature tiles are fully
            # independent, so this axis can shard across v7x's two TensorCores.
            dimension_semantics=("parallel",),
            vmem_limit_bytes=vmem_limit,
        ),
    )(xn, w_t)


def init_params(key, input_dim, output_dim):
    # kaiming_normal_(mode='fan_in', nonlinearity='leaky_relu', a=0):
    # gain = sqrt(2), std = gain / sqrt(fan_in); bias zeros.
    std = (2.0 / input_dim) ** 0.5
    w = jax.random.normal(key, (output_dim, input_dim), jnp.float32) * std
    b = jnp.zeros((1, output_dim), jnp.float32)
    # Pre-transpose for the kernel and store in bf16 (streamed bf16 from HBM).
    return w.T.astype(jnp.bfloat16), b


def reference(x, w_t_f32, b):
    """Pure-JAX f32 reference of the module's training-mode forward."""
    mu = jnp.mean(x, axis=-1, keepdims=True)
    var = jnp.mean((x - mu) ** 2, axis=-1, keepdims=True)
    xn = (x - mu) / jnp.sqrt(var + LN_EPS)
    y = xn @ w_t_f32 + b                    # bias kept here; it cancels in BN
    bm = jnp.mean(y, axis=0, keepdims=True)
    bv = jnp.mean((y - bm) ** 2, axis=0, keepdims=True)
    yn = (y - bm) / jnp.sqrt(bv + BN_EPS)
    return jnp.where(yn >= 0, yn, LEAKY_SLOPE * yn)


if __name__ == "__main__":
    # Small but multi-tile: D_OUT=256 with tile_n=128 exercises the D_out grid,
    # the resident bf16-xn reuse, and the LN pre-pass -> main-kernel handoff.
    B, D_IN, D_OUT = 16, 64, 256

    key = jax.random.PRNGKey(0)
    kx, kw = jax.random.split(key)
    x = jax.random.normal(kx, (B, D_IN), jnp.float32)
    w_t_bf16, b = init_params(kw, D_IN, D_OUT)

    out = simple_encoder(x, w_t_bf16, tile_n=128)
    out = jax.block_until_ready(out)

    # Reference uses the same (bf16-quantized) weight values in f32 math, so
    # the comparison isolates kernel correctness from weight quantization; the
    # remaining gap is the intentional bf16-activation / bf16-MXU trade.
    ref = reference(x, w_t_bf16.astype(jnp.float32), b)
    assert out.shape == (B, D_OUT)
    assert jnp.allclose(out, ref, atol=5e-2, rtol=5e-2)

    print("KERNEL_OK")
</pallas_src>

<mosaic_0001>
module attributes {stable_mosaic.version = 11 : i64} {
  func.func @layernorm_kernel(%arg0: i32, %arg1: memref<16x64xf32, #tpu.memory_space<vmem>>, %arg2: memref<16x64xbf16, #tpu.memory_space<vmem>>) attributes {dimension_semantics = [#tpu.dimension_semantics<parallel>], iteration_bounds = array<i64: 1>, scalar_prefetch = 0 : i64, scratch_operands = 0 : i64, tpu.core_type = #tpu.core_type<tc>, window_params = [{transform_indices = @transform_0, window_bounds = array<i64: 16, 64>}, {transform_indices = @transform_1, window_bounds = array<i64: 16, 64>}]} {
    %c0 = arith.constant 0 : index
    %c0_0 = arith.constant 0 : index
    %0 = vector.load %arg1[%c0, %c0_0] : memref<16x64xf32, #tpu.memory_space<vmem>>, vector<16x64xf32>
    %cst = arith.constant dense<0.000000e+00> : vector<16xf32>
    %1 = vector.multi_reduction <add>, %0, %cst [1] : vector<16x64xf32> to vector<16xf32>
    %2 = vector.shape_cast %1 : vector<16xf32> to vector<16x1xf32>
    %cst_1 = arith.constant 6.400000e+01 : f32
    %3 = vector.broadcast %cst_1 : f32 to vector<16x1xf32>
    %4 = arith.divf %2, %3 : vector<16x1xf32>
    %5 = vector.broadcast %4 : vector<16x1xf32> to vector<16x64xf32>
    %6 = arith.subf %0, %5 : vector<16x64xf32>
    %7 = arith.mulf %6, %6 : vector<16x64xf32>
    %cst_2 = arith.constant dense<0.000000e+00> : vector<16xf32>
    %8 = vector.multi_reduction <add>, %7, %cst_2 [1] : vector<16x64xf32> to vector<16xf32>
    %9 = vector.shape_cast %8 : vector<16xf32> to vector<16x1xf32>
    %cst_3 = arith.constant 6.400000e+01 : f32
    %10 = vector.broadcast %cst_3 : f32 to vector<16x1xf32>
    %11 = arith.divf %9, %10 : vector<16x1xf32>
    %cst_4 = arith.constant 9.99999974E-6 : f32
    %12 = vector.broadcast %cst_4 : f32 to vector<16x1xf32>
    %13 = arith.addf %11, %12 : vector<16x1xf32>
    %14 = math.rsqrt %13 : vector<16x1xf32>
    %15 = vector.broadcast %14 : vector<16x1xf32> to vector<16x64xf32>
    %16 = arith.mulf %6, %15 : vector<16x64xf32>
    %17 = arith.truncf %16 : vector<16x64xf32> to vector<16x64xbf16>
    %c0_5 = arith.constant 0 : index
    %c0_6 = arith.constant 0 : index
    %18 = vector.load %arg2[%c0_5, %c0_6] : memref<16x64xbf16, #tpu.memory_space<vmem>>, vector<16x64xbf16>
    tpu.vector_store %arg2[%c0_5, %c0_6], %17 {strides = array<i32>} : memref<16x64xbf16, #tpu.memory_space<vmem>>, vector<16x64xbf16>,
    return
  }
  func.func @transform_0(%arg0: i32) -> (i32, i32) {
    %c0_i32 = arith.constant 0 : i32
    %c0_i32_0 = arith.constant 0 : i32
    return %arg0, %c0_i32 : i32, i32
  }
  func.func @transform_1(%arg0: i32) -> (i32, i32) {
    %c0_i32 = arith.constant 0 : i32
    %c0_i32_0 = arith.constant 0 : i32
    return %arg0, %c0_i32 : i32, i32
  }
}

</mosaic_0001>

<llo_original>
// kernel: tpu_custom_call.1
$region0: #{tpu_custom_call.1}
  #allocation0 [shape = 'u32[]', space=smem, size = 0x4, offset = 0x4, fixed_abs, tag = 'smem constant byte address 0x4 - core index']
  #allocation1 [shape = 'u32[144,128]{1,0:T(1,128)}', space=vmem, size = 0x12000, scoped, tag = 'internal scratch']
  %s0 = inlined_call_operand.hbm [shape: f32[16,64], index: 0, kind: input, shape index: {}]
  %s1 = inlined_call_operand.hbm [shape: bf16[16,64], index: 1, kind: output, shape index: {}]
  %s2 = sld [smem:[#allocation0]]
  $region18: #{tpu_custom_call.1} parent=0
    _
  %s4 = ssub.s32 1, %s2
  %s5 = scalar_select 0, %s4, %s2
  $region1: #{tpu_custom_call.1} parent=0
    #allocation2 [shape = 'u8[8192]{0}', space=vmem, size = 0x2000, scoped, tag = 'input window, operand 0, single buffered']
    #allocation3 [shape = 's32[1]{0}', space=sflag, size = 0x4, scoped, tag = 'scoped memory for tpu_custom_call.1']
    #allocation4 [shape = 's32[1]{0}', space=sflag, size = 0x4, scoped, tag = 'scoped memory for tpu_custom_call.1']
    #allocation5 [shape = 'u8[4096]{0}', space=vmem, size = 0x1000, scoped, tag = 'output window, operand 0, single buffered']
    %6 = vsyncpa [#allocation3], 0
    %7 = vsyncpa [#allocation4], 0
    // Predicated region
    $region2: #{tpu_custom_call.1} parent=1 // pred_check
      _
    $region3: #{tpu_custom_call.1} parent=1 // pred_check_branch
      %9 = sbr.rel (0) target = $region5
    $region4: #{tpu_custom_call.1} parent=1 // pred_region
      %s11 = ssub.s32 256, 256
      %12 = vsyncadd [#allocation3], %s11
      %s13 = sshll.u32 [#allocation2], 4
      %s14 = int_to_ptr.vmem [resolvable:$true] %s13
      %19 = dma.hbm_to_vmem [thread:$0]  %s0, 256, %s14, [#allocation3], 128, 128, 8
    $region5: #{tpu_custom_call.1} parent=1 // pred_fallthru
      _
    // Predicated region
    $region6: #{tpu_custom_call.1} parent=1 // pred_check
      _
    $region7: #{tpu_custom_call.1} parent=1 // pred_check_branch
      %21 = sbr.rel (0) target = $region9
    $region8: #{tpu_custom_call.1} parent=1 // pred_region
      %22 = dma.done [#allocation3], 256
    $region9: #{tpu_custom_call.1} parent=1 // pred_fallthru
      _
    %v23 = vld [vmem:[#allocation2] sm:$0xff]
    %v24 = vld [vmem:[#allocation2 + $0x8] sm:$0xff]
    %vm25 = vcmask 523264
    %v26 = vsel %vm25, %v23, 0.0
    %27 = vadd.xlane.f32.xlu0 %v26
    %v28 = vpop.xlane.xlu0 %27
    %v29 = vsel %vm25, %v24, 0.0
    %30 = vadd.xlane.f32.xlu0 %v29
    %v31 = vpop.xlane.xlu0 %30
    %v32 = vrcp.pop 64.0
    %v33 = vmul.f32 %v28, %v32
    %v34 = vmul.f32 %v31, %v32
    %v35 = vsub.f32 %v23, %v33
    %v36 = vsub.f32 %v24, %v34
    %v37 = vmul.f32 %v35, %v35
    %v38 = vmul.f32 %v36, %v36
    %v39 = vsel %vm25, %v37, 0.0
    %40 = vadd.xlane.f32.xlu0 %v39
    %v41 = vpop.xlane.xlu0 %40
    %v42 = vsel %vm25, %v38, 0.0
    %43 = vadd.xlane.f32.xlu0 %v42
    %v44 = vpop.xlane.xlu0 %43
    %v45 = vmul.f32 %v41, %v32
    %v46 = vmul.f32 %v44, %v32
    %v47 = vadd.f32 %v45, 1e-05
    %v48 = vadd.f32 %v46, 1e-05
    %v49 = vrsqrt.pop %v47
    %v50 = vrsqrt.pop %v48
    %v51 = vmul.f32 %v35, %v49
    %v52 = vmul.f32 %v36, %v50
    %v53 = vpack.c.bf16 %v52, %v51
    %v55 = vunpack.c.l.b16 %v53
    %v56 = vunpack.c.h.b16 %v53
    %v57 = vpack.c.b16 %v55, %v55
    %v58 = vpack.c.b16 %v56, %v56
    %vm61 = vcmask 519168
    %62 = vst.msk [vmem:[#allocation5] sm:$0xf] %vm61, %v57
    %63 = vst.msk [vmem:[#allocation5 + $0x4] sm:$0xf] %vm61, %v58
    // Predicated region
    $region10: #{tpu_custom_call.1} parent=1 // pred_check
      _
    $region11: #{tpu_custom_call.1} parent=1 // pred_check_branch
      %65 = sbr.rel (0) target = $region13
    $region12: #{tpu_custom_call.1} parent=1 // pred_region
      %s67 = ssub.s32 128, 128
      %68 = vsyncadd [#allocation4], %s67
      %s69 = sshll.u32 [#allocation5], 4
      %s70 = int_to_ptr.vmem [resolvable:$true] %s69
      %75 = dma.vmem_to_hbm [thread:$0]  %s70, 128, %s1, [#allocation4], 64, 64, 4
    $region13: #{tpu_custom_call.1} parent=1 // pred_fallthru
      _
    // Predicated region
    $region14: #{tpu_custom_call.1} parent=1 // pred_check
      _
    $region15: #{tpu_custom_call.1} parent=1 // pred_check_branch
      %77 = sbr.rel (0) target = $region17
    $region16: #{tpu_custom_call.1} parent=1 // pred_region
      %78 = dma.done [#allocation4], 128
    $region17: #{tpu_custom_call.1} parent=1 // pred_fallthru
      _
    %79 = vsyncpa [#allocation3], 1
    %80 = vsyncpa [#allocation4], 1

</llo_original>
